<compile_context>
chip_gen: v6e
topology: v6e:2x2x1
jax: 0.10.0
libtpu: 0.0.40
codegen_flags: <defaults>
</compile_context>

<pallas_src>
import functools

import jax
import jax.numpy as jnp
from jax.experimental import pallas as pl
from jax.experimental.pallas import tpu as pltpu


H_PAD = 128   # hidden padded to a full lane width (64 -> 128)
N_PAD = 128   # fc2 weight columns padded to a full lane width for the MXU


def _round_up(x: int, m: int) -> int:
    return ((x + m - 1) // m) * m


def mlp_kernel(x_ref, w1_ref, b1_ref, w2_ref, b2_ref, o_ref):
    nc = o_ref.shape[-1]                        # true num_classes (static)
    # fc1: (TB, in) @ (in, H_PAD); bf16 operands, f32 MXU accumulation.
    x = x_ref[...].astype(w1_ref.dtype)         # f32 -> bf16 in VMEM
    h = jnp.dot(x, w1_ref[...], preferred_element_type=jnp.float32)
    h = jnp.maximum(h + b1_ref[...], 0.0)       # bias + ReLU in f32 (v5e-safe)
    # fc2: (TB, H_PAD) @ (H_PAD, N_PAD); padded rows/columns of W2 are zero.
    y = jnp.dot(h.astype(w2_ref.dtype), w2_ref[...],
                preferred_element_type=jnp.float32)
    # Only the real num_classes columns are written back to HBM.
    o_ref[...] = (y[:, :nc] + b2_ref[...]).astype(o_ref.dtype)


def prepare_params(w1, b1, w2, b2, *, compute_dtype=jnp.bfloat16):
    """Pads/casts the tiny weights once (call at init, not per forward).

    w1: [input_size, 64], b1: [64], w2: [64, num_classes], b2: [num_classes]
    (weights stored [in, out], i.e. transposed vs PyTorch's [out, in]).
    """
    input_size, hidden = w1.shape
    num_classes = w2.shape[1]
    assert hidden <= H_PAD and num_classes <= N_PAD and input_size <= 128, (
        "shapes exceed the padded layout this kernel assumes")

    w1_p = jnp.zeros((input_size, H_PAD), compute_dtype)
    w1_p = w1_p.at[:, :hidden].set(w1.astype(compute_dtype))
    b1_p = jnp.zeros((1, H_PAD), jnp.float32)
    b1_p = b1_p.at[0, :hidden].set(b1.reshape(-1).astype(jnp.float32))
    w2_p = jnp.zeros((H_PAD, N_PAD), compute_dtype)
    w2_p = w2_p.at[:hidden, :num_classes].set(w2.astype(compute_dtype))
    b2_p = b2.reshape(1, num_classes).astype(jnp.float32)   # stays narrow
    return w1_p, b1_p, w2_p, b2_p


@functools.partial(jax.jit, static_argnames=("block_b",))
def neural_network_forward(x, w1_p, b1_p, w2_p, b2_p, *, block_b=4096):
    """Computes relu(x @ w1 + b1) @ w2 + b2 (same math as the PyTorch module).

    x: [B, input_size] f32; params from prepare_params().
    Returns [B, num_classes] f32.
    """
    B, input_size = x.shape
    num_classes = b2_p.shape[-1]

    # Batch tile: large (multiple of 16) to amortize ~0.35us per grid step.
    b_min = _round_up(B, 16)
    tb = min(block_b, b_min)
    b_pad = _round_up(B, tb)
    # v7x: keep >=2 grid steps when possible so both TensorCores get work
    # (no-op on single-core v5e/v6e).
    if b_pad // tb < 2 and b_min >= 32:
        tb = _round_up((B + 1) // 2, 16)
        b_pad = _round_up(B, tb)

    # Only pad the batch dimension, and only if B is not a tile multiple.
    x_p = x if b_pad == B else jnp.pad(x, ((0, b_pad - B), (0, 0)))

    cost = pl.CostEstimate(
        flops=2 * b_pad * (input_size * H_PAD + H_PAD * N_PAD),
        transcendentals=0,
        bytes_accessed=(b_pad * input_size * 4            # x (f32, unpadded cols)
                        + w1_p.size * 2 + w2_p.size * 2   # bf16 weights
                        + b1_p.size * 4 + b2_p.size * 4   # f32 biases
                        + b_pad * num_classes * 4),       # narrow f32 output
    )

    out = pl.pallas_call(
        mlp_kernel,
        out_shape=jax.ShapeDtypeStruct((b_pad, num_classes), jnp.float32),
        grid=(b_pad // tb,),
        in_specs=[
            pl.BlockSpec((tb, input_size), lambda i: (i, 0)),     # x: batch-tiled
            pl.BlockSpec((input_size, H_PAD), lambda i: (0, 0)),  # W1: resident
            pl.BlockSpec((1, H_PAD), lambda i: (0, 0)),           # b1: resident
            pl.BlockSpec((H_PAD, N_PAD), lambda i: (0, 0)),       # W2: resident
            pl.BlockSpec((1, num_classes), lambda i: (0, 0)),     # b2: resident
        ],
        out_specs=pl.BlockSpec((tb, num_classes), lambda i: (i, 0)),
        compiler_params=pltpu.CompilerParams(
            dimension_semantics=("parallel",),
            vmem_limit_bytes=32 * 1024 * 1024),
        cost_estimate=cost,
    )(x_p, w1_p, b1_p, w2_p, b2_p)

    return out if b_pad == B else out[:B]


if __name__ == "__main__":
    key = jax.random.PRNGKey(0)
    kx, k1, k2, k3, k4 = jax.random.split(key, 5)

    B, input_size, hidden, num_classes = 8, 4, 64, 3
    bound1 = 1.0 / jnp.sqrt(float(input_size))
    bound2 = 1.0 / jnp.sqrt(float(hidden))

    # Weights stored as [in, out] (transposed vs PyTorch's [out, in]),
    # PyTorch-style uniform init bounds.
    x = jax.random.normal(kx, (B, input_size), jnp.float32)
    w1 = jax.random.uniform(k1, (input_size, hidden), jnp.float32, -bound1, bound1)
    b1 = jax.random.uniform(k2, (hidden,), jnp.float32, -bound1, bound1)
    w2 = jax.random.uniform(k3, (hidden, num_classes), jnp.float32, -bound2, bound2)
    b2 = jax.random.uniform(k4, (num_classes,), jnp.float32, -bound2, bound2)

    # Pad/cast the parameters ONCE (hoisted out of the per-call path).
    params = prepare_params(w1, b1, w2, b2)

    out = jax.block_until_ready(neural_network_forward(x, *params))
    assert out.shape == (B, num_classes)

    # Reference mirroring the kernel numerics (bf16 operands, f32 accumulation).
    bf = jnp.bfloat16
    h_ref = jnp.maximum(
        x.astype(bf).astype(jnp.float32) @ w1.astype(bf).astype(jnp.float32) + b1, 0.0)
    ref_bf = (h_ref.astype(bf).astype(jnp.float32)
              @ w2.astype(bf).astype(jnp.float32) + b2)
    assert jnp.allclose(out, ref_bf, atol=2e-3, rtol=2e-3), "mismatch vs bf16 reference"

    # Reference matching the PyTorch module in pure f32 (loose tol for bf16 cast).
    ref_f32 = jnp.maximum(x @ w1 + b1, 0.0) @ w2 + b2
    assert jnp.allclose(out, ref_f32, atol=3e-2, rtol=3e-2), "mismatch vs f32 reference"

    print("KERNEL_OK")
</pallas_src>

<mosaic_0001>
module attributes {stable_mosaic.version = 11 : i64} {
  func.func @mlp_kernel(%arg0: i32, %arg1: memref<16x4xf32, #tpu.memory_space<vmem>>, %arg2: memref<4x128xbf16, #tpu.memory_space<vmem>>, %arg3: memref<1x128xf32, #tpu.memory_space<vmem>>, %arg4: memref<128x128xbf16, #tpu.memory_space<vmem>>, %arg5: memref<1x3xf32, #tpu.memory_space<vmem>>, %arg6: memref<16x3xf32, #tpu.memory_space<vmem>>) attributes {dimension_semantics = [#tpu.dimension_semantics<parallel>], iteration_bounds = array<i64: 1>, scalar_prefetch = 0 : i64, scratch_operands = 0 : i64, tpu.core_type = #tpu.core_type<tc>, window_params = [{transform_indices = @transform_0, window_bounds = array<i64: 16, 4>}, {pipeline_mode = #tpu.pipeline_mode<synchronous>, transform_indices = @transform_1, window_bounds = array<i64: 4, 128>}, {pipeline_mode = #tpu.pipeline_mode<synchronous>, transform_indices = @transform_2, window_bounds = array<i64: 1, 128>}, {pipeline_mode = #tpu.pipeline_mode<synchronous>, transform_indices = @transform_3, window_bounds = array<i64: 128, 128>}, {pipeline_mode = #tpu.pipeline_mode<synchronous>, transform_indices = @transform_4, window_bounds = array<i64: 1, 3>}, {transform_indices = @transform_5, window_bounds = array<i64: 16, 3>}]} {
    %c0 = arith.constant 0 : index
    %c0_0 = arith.constant 0 : index
    %0 = vector.load %arg1[%c0, %c0_0] : memref<16x4xf32, #tpu.memory_space<vmem>>, vector<16x4xf32>
    %1 = arith.truncf %0 : vector<16x4xf32> to vector<16x4xbf16>
    %c0_1 = arith.constant 0 : index
    %c0_2 = arith.constant 0 : index
    %2 = vector.load %arg2[%c0_1, %c0_2] : memref<4x128xbf16, #tpu.memory_space<vmem>>, vector<4x128xbf16>
    %cst = arith.constant dense<0.000000e+00> : vector<16x128xf32>
    %3 = tpu.matmul %1, %2, %cst {dimension_numbers = #tpu.dot_dimension_numbers<[1], [0], [0], [1], [0, 0, 1, 1], [], []>} : vector<16x4xbf16>, vector<4x128xbf16>, vector<16x128xf32> -> vector<16x128xf32>
    %c0_3 = arith.constant 0 : index
    %c0_4 = arith.constant 0 : index
    %4 = vector.load %arg3[%c0_3, %c0_4] : memref<1x128xf32, #tpu.memory_space<vmem>>, vector<1x128xf32>
    %5 = vector.broadcast %4 : vector<1x128xf32> to vector<16x128xf32>
    %6 = arith.addf %3, %5 : vector<16x128xf32>
    %cst_5 = arith.constant 0.000000e+00 : f32
    %7 = vector.broadcast %cst_5 : f32 to vector<16x128xf32>
    %8 = arith.maximumf %6, %7 : vector<16x128xf32>
    %9 = arith.truncf %8 : vector<16x128xf32> to vector<16x128xbf16>
    %c0_6 = arith.constant 0 : index
    %c0_7 = arith.constant 0 : index
    %10 = vector.load %arg4[%c0_6, %c0_7] : memref<128x128xbf16, #tpu.memory_space<vmem>>, vector<128x128xbf16>
    %cst_8 = arith.constant dense<0.000000e+00> : vector<16x128xf32>
    %11 = tpu.matmul %9, %10, %cst_8 {dimension_numbers = #tpu.dot_dimension_numbers<[1], [0], [0], [1], [0, 0, 1, 1], [], []>} : vector<16x128xbf16>, vector<128x128xbf16>, vector<16x128xf32> -> vector<16x128xf32>
    %12 = vector.extract_strided_slice %11 {offsets = [0, 0], sizes = [16, 3], strides = [1, 1]} : vector<16x128xf32> to vector<16x3xf32>
    %c0_9 = arith.constant 0 : index
    %c0_10 = arith.constant 0 : index
    %13 = vector.load %arg5[%c0_9, %c0_10] : memref<1x3xf32, #tpu.memory_space<vmem>>, vector<1x3xf32>
    %14 = vector.broadcast %13 : vector<1x3xf32> to vector<16x3xf32>
    %15 = arith.addf %12, %14 : vector<16x3xf32>
    %c0_11 = arith.constant 0 : index
    %c0_12 = arith.constant 0 : index
    %16 = vector.load %arg6[%c0_11, %c0_12] : memref<16x3xf32, #tpu.memory_space<vmem>>, vector<16x3xf32>
    tpu.vector_store %arg6[%c0_11, %c0_12], %15 {strides = array<i32>} : memref<16x3xf32, #tpu.memory_space<vmem>>, vector<16x3xf32>,
    return
  }
  func.func @transform_0(%arg0: i32) -> (i32, i32) {
    %c0_i32 = arith.constant 0 : i32
    %c0_i32_0 = arith.constant 0 : i32
    return %arg0, %c0_i32 : i32, i32
  }
  func.func @transform_1(%arg0: i32) -> (i32, i32) {
    %c0_i32 = arith.constant 0 : i32
    %c0_i32_0 = arith.constant 0 : i32
    %c0_i32_1 = arith.constant 0 : i32
    return %c0_i32, %c0_i32_0 : i32, i32
  }
  func.func @transform_2(%arg0: i32) -> (i32, i32) {
    %c0_i32 = arith.constant 0 : i32
    %c0_i32_0 = arith.constant 0 : i32
    %c0_i32_1 = arith.constant 0 : i32
    return %c0_i32, %c0_i32_0 : i32, i32
  }
  func.func @transform_3(%arg0: i32) -> (i32, i32) {
    %c0_i32 = arith.constant 0 : i32
    %c0_i32_0 = arith.constant 0 : i32
    %c0_i32_1 = arith.constant 0 : i32
    return %c0_i32, %c0_i32_0 : i32, i32
  }
  func.func @transform_4(%arg0: i32) -> (i32, i32) {
    %c0_i32 = arith.constant 0 : i32
    %c0_i32_0 = arith.constant 0 : i32
    %c0_i32_1 = arith.constant 0 : i32
    return %c0_i32, %c0_i32_0 : i32, i32
  }
  func.func @transform_5(%arg0: i32) -> (i32, i32) {
    %c0_i32 = arith.constant 0 : i32
    %c0_i32_0 = arith.constant 0 : i32
    return %arg0, %c0_i32 : i32, i32
  }
}

</mosaic_0001>

<llo_original>
// kernel: neural_network_forward.1
$region0: #{neural_network_forward.1}
  #allocation0 [shape = 'u32[]', space=smem, size = 0x4, offset = 0x4, fixed_abs, tag = 'smem constant byte address 0x4 - core index']
  #allocation1 [shape = 'u32[144,128]{1,0:T(1,128)}', space=vmem, size = 0x12000, scoped, tag = 'internal scratch']
  %s0 = inlined_call_operand.vmem [shape: f32[16,4], index: 0, kind: input, shape index: {}]
  %s1 = inlined_call_operand.vmem [shape: bf16[4,128], index: 1, kind: input, shape index: {}]
  %s2 = inlined_call_operand.vmem [shape: f32[1,128], index: 2, kind: input, shape index: {}]
  %s3 = inlined_call_operand.hbm [shape: bf16[128,128], index: 3, kind: input, shape index: {}]
  %s4 = inlined_call_operand.vmem [shape: f32[1,3], index: 4, kind: input, shape index: {}]
  %s5 = inlined_call_operand.vmem [shape: f32[16,3], index: 5, kind: output, shape index: {}]
  %s6 = sld [smem:[#allocation0]]
  $region34: #{neural_network_forward.1} parent=0
    _
  %s8 = ssub.s32 1, %s6
  %s9 = scalar_select 0, %s8, %s6
  $region1: #{neural_network_forward.1} parent=0
    #allocation2 [shape = 'u8[32768]{0}', space=vmem, size = 0x8000, scoped, tag = 'input window, operand 3, single buffered']
    #allocation3 [shape = 's32[1]{0}', space=sflag, size = 0x4, scoped, tag = 'scoped memory for neural_network_forward.1']
    %10 = vsyncpa [#allocation3], 0
    // Predicated region
    $region2: #{neural_network_forward.1} parent=1 // pred_check
      _
    $region3: #{neural_network_forward.1} parent=1 // pred_check_branch
      %12 = sbr.rel (0) target = $region5
    $region4: #{neural_network_forward.1} parent=1 // pred_region
      _
    $region5: #{neural_network_forward.1} parent=1 // pred_fallthru
      _
    // Predicated region
    $region6: #{neural_network_forward.1} parent=1 // pred_check
      _
    $region7: #{neural_network_forward.1} parent=1 // pred_check_branch
      %14 = sbr.rel (0) target = $region9
    $region8: #{neural_network_forward.1} parent=1 // pred_region
      _
    $region9: #{neural_network_forward.1} parent=1 // pred_fallthru
      _
    // Predicated region
    $region10: #{neural_network_forward.1} parent=1 // pred_check
      _
    $region11: #{neural_network_forward.1} parent=1 // pred_check_branch
      %16 = sbr.rel (0) target = $region13
    $region12: #{neural_network_forward.1} parent=1 // pred_region
      _
    $region13: #{neural_network_forward.1} parent=1 // pred_fallthru
      _
    // Predicated region
    $region14: #{neural_network_forward.1} parent=1 // pred_check
      _
    $region15: #{neural_network_forward.1} parent=1 // pred_check_branch
      %18 = sbr.rel (0) target = $region17
    $region16: #{neural_network_forward.1} parent=1 // pred_region
      %s20 = ssub.s32 1024, 1024
      %21 = vsyncadd [#allocation3], %s20
      %s22 = sshll.u32 [#allocation2], 4
      %s23 = int_to_ptr.vmem [resolvable:$true] %s22
      %28 = dma.hbm_to_vmem [thread:$0]  %s3, 1024, %s23, [#allocation3], 64, 64, 4
    $region17: #{neural_network_forward.1} parent=1 // pred_fallthru
      _
    // Predicated region
    $region18: #{neural_network_forward.1} parent=1 // pred_check
      _
    $region19: #{neural_network_forward.1} parent=1 // pred_check_branch
      %30 = sbr.rel (0) target = $region21
    $region20: #{neural_network_forward.1} parent=1 // pred_region
      _
    $region21: #{neural_network_forward.1} parent=1 // pred_fallthru
      _
    // Predicated region
    $region22: #{neural_network_forward.1} parent=1 // pred_check
      _
    $region23: #{neural_network_forward.1} parent=1 // pred_check_branch
      %32 = sbr.rel (0) target = $region25
    $region24: #{neural_network_forward.1} parent=1 // pred_region
      %33 = dma.done [#allocation3], 1024
    $region25: #{neural_network_forward.1} parent=1 // pred_fallthru
      _
    %v35 = vld [vmem:[%s0] sm:$0xff]
    %v36 = vld [vmem:[%s0 + $0x8] sm:$0xff]
    %v37 = vpack.c.bf16 %v36, %v35
    %v38 = vld [vmem:[%s1] sm:$0x3]
    %v39 = vld [vmem:[%s2] sm:$0x1]
    %v41 = vlaneseq
    %v42 = vshrl.u32 %v41, 7
    %v43 = vsub.s32 0, %v42
    %v44 = vrot.slane %v39, %v43
    %vm46 = vcmask 31744
    %v48 = vsel %vm46, %v37, 0
    %vm50 = vcmask 1041408
    %v52 = vsel %vm50, %v38, 0
    %54 = vmatprep.subr.bf16.mxu0 0
    %55 = vmatpush1.bf16.msra.mxu0 0
    %56 = vmatprep.subr.bf16.mxu0 0
    %57 = vmatpush1.bf16.msra.mxu0 0
    %58 = vmatprep.subr.bf16.mxu0 0
    %59 = vmatpush1.bf16.msra.mxu0 0
    %60 = vmatprep.subr.bf16.mxu0 0
    %61 = vmatpush1.bf16.msra.mxu0 0
    %62 = vmatprep.subr.bf16.mxu0 0
    %63 = vmatpush1.bf16.msra.mxu0 0
    %64 = vmatprep.subr.bf16.mxu0 0
    %65 = vmatpush1.bf16.msra.mxu0 0
    %66 = vmatprep.subr.bf16.mxu0 0
    %67 = vmatpush1.bf16.msra.mxu0 0
    %68 = vmatprep.subr.bf16.mxu0 0
    %69 = vmatpush1.bf16.msra.mxu0 %v52
    %70 = vmatprep.subr.bf16.mxu0 0
    %71 = vmatpush2.bf16.msra.mxu0 0
    %72 = vmatprep.subr.bf16.mxu0 0
    %73 = vmatpush2.bf16.msra.mxu0 0
    %74 = vmatprep.subr.bf16.mxu0 0
    %75 = vmatpush2.bf16.msra.mxu0 0
    %76 = vmatprep.subr.bf16.mxu0 0
    %77 = vmatpush2.bf16.msra.mxu0 0
    %78 = vmatprep.subr.bf16.mxu0 0
    %79 = vmatpush2.bf16.msra.mxu0 0
    %80 = vmatprep.subr.bf16.mxu0 0
    %81 = vmatpush2.bf16.msra.mxu0 0
    %82 = vmatprep.subr.bf16.mxu0 0
    %83 = vmatpush2.bf16.msra.mxu0 0
    %84 = vmatprep.subr.bf16.mxu0 0
    %85 = vmatpush2.bf16.msra.mxu0 0
    %86 = vmatprep.mubr.bf16.mxu0 0
    %87 = vmatmul.mubr.bf16.gmra.mxu0 %v48
    %v88 = vpop.f32.mrf.mxu0
    %v89 = vadd.f32 %v44, %v88
    %v90 = vpop.f32.mrf.mxu0
    %v91 = vpop.f32.mrf.mxu0
    %v92 = vadd.f32 %v44, %v91
    %v93 = vpop.f32.mrf.mxu0
    %94 = vdwg.mxu0
    %v95 = vmax.f32 %v89, 0.0
    %v96 = vmax.f32 %v92, 0.0
    %v97 = vpack.c.bf16 %v96, %v95
    %v98 = vld [vmem:[#allocation2] sm:$0xf]
    %v99 = vld [vmem:[#allocation2 + $0x4] sm:$0xf]
    %v100 = vld [vmem:[#allocation2 + $0x8] sm:$0xf]
    %v101 = vld [vmem:[#allocation2 + $0xc] sm:$0xf]
    %v102 = vld [vmem:[#allocation2 + $0x10] sm:$0xf]
    %v103 = vld [vmem:[#allocation2 + $0x14] sm:$0xf]
    %v104 = vld [vmem:[#allocation2 + $0x18] sm:$0xf]
    %v105 = vld [vmem:[#allocation2 + $0x1c] sm:$0xf]
    %v106 = vld [vmem:[#allocation2 + $0x20] sm:$0xf]
    %v107 = vld [vmem:[#allocation2 + $0x24] sm:$0xf]
    %v108 = vld [vmem:[#allocation2 + $0x28] sm:$0xf]
    %v109 = vld [vmem:[#allocation2 + $0x2c] sm:$0xf]
    %v110 = vld [vmem:[#allocation2 + $0x30] sm:$0xf]
    %v111 = vld [vmem:[#allocation2 + $0x34] sm:$0xf]
    %v112 = vld [vmem:[#allocation2 + $0x38] sm:$0xf]
    %v113 = vld [vmem:[#allocation2 + $0x3c] sm:$0xf]
    %v130 = vunpack.c.l.b16 %v98
    %v131 = vunpack.c.l.b16 %v99
    %v132 = vunpack.c.l.b16 %v100
    %v133 = vunpack.c.l.b16 %v101
    %v134 = vunpack.c.l.b16 %v102
    %v135 = vunpack.c.l.b16 %v103
    %v136 = vunpack.c.l.b16 %v104
    %v137 = vunpack.c.l.b16 %v105
    %v138 = vunpack.c.l.b16 %v106
    %v139 = vunpack.c.l.b16 %v107
    %v140 = vunpack.c.l.b16 %v108
    %v141 = vunpack.c.l.b16 %v109
    %v142 = vunpack.c.l.b16 %v110
    %v143 = vunpack.c.l.b16 %v111
    %v144 = vunpack.c.l.b16 %v112
    %v145 = vunpack.c.l.b16 %v113
    %v146 = vpack.c.b16 %v131, %v130
    %v147 = vpack.c.b16 %v133, %v132
    %v148 = vpack.c.b16 %v135, %v134
    %v149 = vpack.c.b16 %v137, %v136
    %v150 = vpack.c.b16 %v139, %v138
    %v151 = vpack.c.b16 %v141, %v140
    %v152 = vpack.c.b16 %v143, %v142
    %v153 = vpack.c.b16 %v145, %v144
    %162 = vmatprep.subr.bf16.mxu0 0
    %163 = vmatpush1.bf16.msra.mxu0 %v153
    %164 = vmatprep.subr.bf16.mxu0 0
    %165 = vmatpush1.bf16.msra.mxu0 %v152
    %166 = vmatprep.subr.bf16.mxu0 0
    %167 = vmatpush1.bf16.msra.mxu0 %v151
    %168 = vmatprep.subr.bf16.mxu0 0
    %169 = vmatpush1.bf16.msra.mxu0 %v150
    %170 = vmatprep.subr.bf16.mxu0 0
    %171 = vmatpush1.bf16.msra.mxu0 %v149
    %172 = vmatprep.subr.bf16.mxu0 0
    %173 = vmatpush1.bf16.msra.mxu0 %v148
    %174 = vmatprep.subr.bf16.mxu0 0
    %175 = vmatpush1.bf16.msra.mxu0 %v147
    %176 = vmatprep.subr.bf16.mxu0 0
    %177 = vmatpush1.bf16.msra.mxu0 %v146
    %178 = vmatprep.subr.bf16.mxu0 0
    %179 = vmatpush2.bf16.msra.mxu0 0
    %180 = vmatprep.subr.bf16.mxu0 0
    %181 = vmatpush2.bf16.msra.mxu0 0
    %182 = vmatprep.subr.bf16.mxu0 0
    %183 = vmatpush2.bf16.msra.mxu0 0
    %184 = vmatprep.subr.bf16.mxu0 0
    %185 = vmatpush2.bf16.msra.mxu0 0
    %186 = vmatprep.subr.bf16.mxu0 0
    %187 = vmatpush2.bf16.msra.mxu0 0
    %188 = vmatprep.subr.bf16.mxu0 0
    %189 = vmatpush2.bf16.msra.mxu0 0
    %190 = vmatprep.subr.bf16.mxu0 0
    %191 = vmatpush2.bf16.msra.mxu0 0
    %192 = vmatprep.subr.bf16.mxu0 0
    %193 = vmatpush2.bf16.msra.mxu0 0
    %194 = vmatprep.mubr.bf16.mxu0 0
    %195 = vmatmul.mubr.bf16.gmra.mxu0 %v97
    %v196 = vpop.f32.mrf.mxu0
    %v197 = vadd.f32 0.0, %v196
    %v198 = vpop.f32.mrf.mxu0
    %v199 = vpop.f32.mrf.mxu0
    %v200 = vadd.f32 0.0, %v199
    %v201 = vpop.f32.mrf.mxu0
    %202 = vdwg.mxu0
    %v203 = vld [vmem:[%s4] sm:$0x1]
    %v205 = vlaneseq
    %v206 = vshrl.u32 %v205, 7
    %v207 = vsub.s32 0, %v206
    %v208 = vrot.slane %v203, %v207
    %v210 = vadd.f32 %v197, %v208
    %v211 = vadd.f32 %v200, %v208
    %vm212 = vcmask 23552
    %213 = vst.msk [vmem:[%s5] sm:$0xff] %vm212, %v210
    %214 = vst.msk [vmem:[%s5 + $0x8] sm:$0xff] %vm212, %v211
    // Predicated region
    $region26: #{neural_network_forward.1} parent=1 // pred_check
      _
    $region27: #{neural_network_forward.1} parent=1 // pred_check_branch
      %216 = sbr.rel (0) target = $region29
    $region28: #{neural_network_forward.1} parent=1 // pred_region
      _
    $region29: #{neural_network_forward.1} parent=1 // pred_fallthru
      _
    // Predicated region
    $region30: #{neural_network_forward.1} parent=1 // pred_check
      _
    $region31: #{neural_network_forward.1} parent=1 // pred_check_branch
      %218 = sbr.rel (0) target = $region33
    $region32: #{neural_network_forward.1} parent=1 // pred_region
      _
    $region33: #{neural_network_forward.1} parent=1 // pred_fallthru
      _
    %219 = vsyncpa [#allocation3], 1

</llo_original>
